<compile_context>
chip_gen: v6e
topology: v6e:2x2x1
jax: 0.10.0
libtpu: 0.0.40
codegen_flags: <defaults>
</compile_context>

<pallas_src>
import math
from functools import partial

import numpy as np
import jax
import jax.numpy as jnp
from jax.experimental import pallas as pl
from jax.experimental.pallas import tpu as pltpu


LANE = 128


def round_up(x, m):
    return ((x + m - 1) // m) * m


# -----------------------------------------------------------------------------
# Layer-size derivation: mirrors DAMGeneralML.__init__ exactly.
# -----------------------------------------------------------------------------
def build_dam_dims(input_dim, num_dim, num_layers):
    hidden = []
    d = input_dim
    if num_layers != 0:
        ratio = max(input_dim / num_dim, num_dim / input_dim)
        coef = ratio ** (1.0 / num_layers)
        for _ in range(num_layers):
            if d * coef > num_dim:
                hidden.append((d, num_dim))
                d = num_dim
            else:
                nd = math.ceil(d * coef)
                hidden.append((d, nd))
                d = nd
    final = (d, num_dim)
    return hidden, final


# -----------------------------------------------------------------------------
# Pallas kernel: the whole DAM MLP head in one kernel, packed parameters.
#   args: a_smem (L,), feats (B, Dpad), w_slab (L+1, Dpad, Dpad),
#         vec_slab (rows_pad, Dpad), out (B, Dpad)
# -----------------------------------------------------------------------------
def make_dam_kernel(num_hidden, eps=1e-5):
    def dam_kernel(a_ref, feats_ref, w_ref, vec_ref, out_ref):
        h = feats_ref[...]                      # (B, Dpad) float32
        row = 0
        for li in range(num_hidden):            # unrolled at trace time
            w = w_ref[li]                       # (Dpad, Dpad), zero-padded
            b = vec_ref[row:row + 1, :]         # (1, Dpad) static slices (free)
            g = vec_ref[row + 1:row + 2, :]
            be = vec_ref[row + 2:row + 3, :]
            row += 3
            # Linear: x @ W + b   (W stored as (in, out) == PyTorch weight.T)
            h = jnp.dot(h, w, preferred_element_type=jnp.float32) + b
            # PReLU with a single shared scalar parameter, read from SMEM
            a = a_ref[li]
            h = jnp.maximum(h, 0.0) + a * jnp.minimum(h, 0.0)
            # BatchNorm1d (train mode, biased variance), folded into one FMA.
            mean = jnp.mean(h, axis=0, keepdims=True)
            c = h - mean
            var = jnp.mean(c * c, axis=0, keepdims=True)
            scale = g * jax.lax.rsqrt(var + eps)        # rsqrt -> EUP slot
            shift = be - mean * scale
            h = h * scale + shift
        wf = w_ref[num_hidden]
        bf = vec_ref[row:row + 1, :]
        out_ref[...] = (
            jnp.dot(h, wf, preferred_element_type=jnp.float32) + bf
        ).astype(out_ref.dtype)

    return dam_kernel


def dam_head_packed(feats_padded, packed, num_hidden):
    """Run the DAM MLP head with a single Pallas call (everything in VMEM)."""
    B, dpad = feats_padded.shape
    vmem = pl.BlockSpec(memory_space=pltpu.MemorySpace.VMEM)
    smem = pl.BlockSpec(memory_space=pltpu.MemorySpace.SMEM)
    return pl.pallas_call(
        make_dam_kernel(num_hidden),
        out_shape=jax.ShapeDtypeStruct((B, dpad), jnp.float32),
        in_specs=[smem, vmem, vmem, vmem],
        out_specs=vmem,
    )(packed["a"], feats_padded, packed["w"], packed["vec"])


# -----------------------------------------------------------------------------
# One-time parameter packing (host-side numpy, no per-tensor device ops):
# 13 tensors -> 3 arrays.
# -----------------------------------------------------------------------------
def pack_head_params(head_params, hidden_dims, final_dims, dpad):
    num_hidden = len(hidden_dims)
    n_w = num_hidden + 1
    n_rows = 3 * num_hidden + 1
    n_rows_pad = round_up(max(n_rows, 8), 8)

    w_slab = np.zeros((n_w, dpad, dpad), np.float32)
    vec_slab = np.zeros((n_rows_pad, dpad), np.float32)
    a_vec = np.zeros((max(num_hidden, 1),), np.float32)

    row = 0
    for i, lp in enumerate(head_params["hidden"]):
        din, dout = hidden_dims[i]
        w_slab[i, :din, :dout] = np.asarray(lp["w"], np.float32)
        vec_slab[row, :dout] = np.asarray(lp["b"], np.float32).reshape(-1)
        vec_slab[row + 1, :dout] = np.asarray(lp["gamma"], np.float32).reshape(-1)
        vec_slab[row + 2, :dout] = np.asarray(lp["beta"], np.float32).reshape(-1)
        a_vec[i] = float(np.asarray(lp["a"], np.float32).reshape(()))
        row += 3
    din, dout = final_dims
    w_slab[num_hidden, :din, :dout] = np.asarray(head_params["final"]["w"], np.float32)
    vec_slab[row, :dout] = np.asarray(head_params["final"]["b"], np.float32).reshape(-1)
    return {
        "a": jnp.asarray(a_vec),
        "w": jnp.asarray(w_slab),
        "vec": jnp.asarray(vec_slab),
    }


# -----------------------------------------------------------------------------
# Synthetic base_model (plain-JAX glue): conv3x3 + ReLU + GAP -> feats, fc -> out
# (the PyTorch module takes an arbitrary plugged-in base_model returning
#  (feats, out); `out` is discarded by DAMGeneralML.forward).
# -----------------------------------------------------------------------------
def base_model(x, p):
    y = jax.lax.conv_general_dilated(
        x, p["conv_w"], window_strides=(1, 1), padding="SAME",
        dimension_numbers=("NCHW", "OIHW", "NCHW"),
    )
    y = y + p["conv_b"][None, :, None, None]
    y = jnp.maximum(y, 0.0)
    feats = jnp.mean(y, axis=(2, 3))           # (B, feat_dim)
    out = feats @ p["fc_w"] + p["fc_b"]        # classifier logits (discarded -> DCE'd)
    return feats, out


# -----------------------------------------------------------------------------
# Pure-JAX reference for the DAM head (for correctness check).
# -----------------------------------------------------------------------------
def dam_head_ref(feats, head_params, eps=1e-5):
    h = feats.astype(jnp.float32)
    for lp in head_params["hidden"]:
        h = h @ lp["w"] + lp["b"]
        h = jnp.maximum(h, 0.0) + lp["a"] * jnp.minimum(h, 0.0)
        mean = jnp.mean(h, axis=0, keepdims=True)
        var = jnp.mean(jnp.square(h - mean), axis=0, keepdims=True)
        h = (h - mean) / jnp.sqrt(var + eps) * lp["gamma"] + lp["beta"]
    return h @ head_params["final"]["w"] + head_params["final"]["b"]


# -----------------------------------------------------------------------------
# Parameter init (deterministic, in-script).
# -----------------------------------------------------------------------------
def init_params(key, in_ch, feat_dim, num_classes, hidden_dims, final_dims):
    def nk():
        nonlocal key
        key, sub = jax.random.split(key)
        return sub

    params = {
        "base": {
            "conv_w": 0.1 * jax.random.normal(nk(), (feat_dim, in_ch, 3, 3), jnp.float32),
            "conv_b": 0.1 * jax.random.normal(nk(), (feat_dim,), jnp.float32),
            "fc_w": 0.1 * jax.random.normal(nk(), (feat_dim, num_classes), jnp.float32),
            "fc_b": 0.1 * jax.random.normal(nk(), (num_classes,), jnp.float32),
        },
        "head": {"hidden": [], "final": None},
    }
    for (din, dout) in hidden_dims:
        params["head"]["hidden"].append({
            "w": (1.0 / math.sqrt(din)) * jax.random.normal(nk(), (din, dout), jnp.float32),
            "b": 0.1 * jax.random.normal(nk(), (1, dout), jnp.float32),
            "a": jnp.full((1, 1), 0.25, jnp.float32),  # nn.PReLU() default init
            "gamma": 1.0 + 0.1 * jax.random.normal(nk(), (1, dout), jnp.float32),
            "beta": 0.1 * jax.random.normal(nk(), (1, dout), jnp.float32),
        })
    din, dout = final_dims
    params["head"]["final"] = {
        "w": (1.0 / math.sqrt(din)) * jax.random.normal(nk(), (din, dout), jnp.float32),
        "b": 0.1 * jax.random.normal(nk(), (1, dout), jnp.float32),
    }
    return params


# -----------------------------------------------------------------------------
# Jitted end-to-end forward (base model glue + Pallas DAM head).
# -----------------------------------------------------------------------------
@partial(jax.jit, static_argnames=("num_hidden", "num_dim", "feat_dim"))
def dam_general_ml_forward(x, base_params, packed_head, *, num_hidden, num_dim, feat_dim):
    feats, _out = base_model(x, base_params)    # `out` is discarded, as in PyTorch
    dpad = packed_head["w"].shape[-1]
    feats_p = jnp.pad(feats, ((0, 0), (0, dpad - feat_dim)))
    out_pad = dam_head_packed(feats_p, packed_head, num_hidden)   # (B, dpad)
    return out_pad[:, :num_dim]                 # lane-dense store in kernel, slice here


if __name__ == "__main__":
    # Small, module-consistent shapes
    B, C, H, W = 2, 4, 16, 16
    feat_dim = 32          # input_dim of the DAM head (= base-model feature dim)
    num_dim = 8
    num_layers = 2
    num_classes = 5

    hidden_dims, final_dims = build_dam_dims(feat_dim, num_dim, num_layers)
    all_dims = [feat_dim] + [d for pair in hidden_dims for d in pair] + list(final_dims)
    dpad = round_up(max(all_dims), LANE)        # pad every feature dim to 128 lanes

    key = jax.random.PRNGKey(0)
    kx, kp = jax.random.split(key)
    x = jax.random.normal(kx, (B, C, H, W), jnp.float32)
    params = init_params(kp, C, feat_dim, num_classes, hidden_dims, final_dims)

    # One-time parameter packing (host-side): 3 kernel inputs instead of 13.
    packed_head = pack_head_params(params["head"], hidden_dims, final_dims, dpad)

    dam_out = dam_general_ml_forward(
        x, params["base"], packed_head,
        num_hidden=num_layers, num_dim=num_dim, feat_dim=feat_dim)
    dam_out = jax.block_until_ready(dam_out)

    # Correctness check against a pure-JAX reference
    feats_ref, _ = base_model(x, params["base"])
    ref = dam_head_ref(feats_ref, params["head"])
    assert dam_out.shape == (B, num_dim)
    assert jnp.allclose(dam_out, ref, atol=1e-4, rtol=1e-4), "mismatch vs reference"

    print("KERNEL_OK")
</pallas_src>

<mosaic_0001>
module attributes {stable_mosaic.version = 11 : i64} {
  func.func @dam_kernel(%arg0: memref<2xf32, #tpu.memory_space<smem>>, %arg1: memref<2x128xf32, #tpu.memory_space<vmem>>, %arg2: memref<3x128x128xf32, #tpu.memory_space<vmem>>, %arg3: memref<8x128xf32, #tpu.memory_space<vmem>>, %arg4: memref<2x128xf32, #tpu.memory_space<vmem>>) attributes {dimension_semantics = [], scalar_prefetch = 0 : i64, scratch_operands = 0 : i64, tpu.core_type = #tpu.core_type<tc>} {
    %c0 = arith.constant 0 : index
    %c0_0 = arith.constant 0 : index
    %0 = vector.load %arg1[%c0, %c0_0] : memref<2x128xf32, #tpu.memory_space<vmem>>, vector<2x128xf32>
    %c0_1 = arith.constant 0 : index
    %c0_2 = arith.constant 0 : index
    %c0_3 = arith.constant 0 : index
    %1 = vector.load %arg2[%c0_1, %c0_2, %c0_3] : memref<3x128x128xf32, #tpu.memory_space<vmem>>, vector<1x128x128xf32>
    %2 = vector.shape_cast %1 : vector<1x128x128xf32> to vector<128x128xf32>
    %c0_4 = arith.constant 0 : index
    %c0_5 = arith.constant 0 : index
    %3 = vector.load %arg3[%c0_4, %c0_5] : memref<8x128xf32, #tpu.memory_space<vmem>>, vector<1x128xf32>
    %c1 = arith.constant 1 : index
    %c0_6 = arith.constant 0 : index
    %4 = vector.load %arg3[%c1, %c0_6] : memref<8x128xf32, #tpu.memory_space<vmem>>, vector<1x128xf32>
    %c2 = arith.constant 2 : index
    %c0_7 = arith.constant 0 : index
    %5 = vector.load %arg3[%c2, %c0_7] : memref<8x128xf32, #tpu.memory_space<vmem>>, vector<1x128xf32>
    %cst = arith.constant dense<0.000000e+00> : vector<2x128xf32>
    %6 = tpu.matmul %0, %2, %cst {dimension_numbers = #tpu.dot_dimension_numbers<[1], [0], [0], [1], [0, 0, 1, 1], [], []>} : vector<2x128xf32>, vector<128x128xf32>, vector<2x128xf32> -> vector<2x128xf32>
    %7 = vector.broadcast %3 : vector<1x128xf32> to vector<2x128xf32>
    %8 = arith.addf %6, %7 : vector<2x128xf32>
    %c0_8 = arith.constant 0 : index
    %9 = memref.load %arg0[%c0_8] : memref<2xf32, #tpu.memory_space<smem>>
    %cst_9 = arith.constant 0.000000e+00 : f32
    %10 = vector.broadcast %cst_9 : f32 to vector<2x128xf32>
    %11 = arith.maximumf %8, %10 : vector<2x128xf32>
    %cst_10 = arith.constant 0.000000e+00 : f32
    %12 = vector.broadcast %cst_10 : f32 to vector<2x128xf32>
    %13 = arith.minimumf %8, %12 : vector<2x128xf32>
    %14 = vector.broadcast %9 : f32 to vector<2x128xf32>
    %15 = arith.mulf %14, %13 : vector<2x128xf32>
    %16 = arith.addf %11, %15 : vector<2x128xf32>
    %cst_11 = arith.constant dense<0.000000e+00> : vector<128xf32>
    %17 = vector.multi_reduction <add>, %16, %cst_11 [0] : vector<2x128xf32> to vector<128xf32>
    %18 = vector.shape_cast %17 : vector<128xf32> to vector<1x128xf32>
    %cst_12 = arith.constant 2.000000e+00 : f32
    %19 = vector.broadcast %cst_12 : f32 to vector<1x128xf32>
    %20 = arith.divf %18, %19 : vector<1x128xf32>
    %21 = vector.broadcast %20 : vector<1x128xf32> to vector<2x128xf32>
    %22 = arith.subf %16, %21 : vector<2x128xf32>
    %23 = arith.mulf %22, %22 : vector<2x128xf32>
    %cst_13 = arith.constant dense<0.000000e+00> : vector<128xf32>
    %24 = vector.multi_reduction <add>, %23, %cst_13 [0] : vector<2x128xf32> to vector<128xf32>
    %25 = vector.shape_cast %24 : vector<128xf32> to vector<1x128xf32>
    %cst_14 = arith.constant 2.000000e+00 : f32
    %26 = vector.broadcast %cst_14 : f32 to vector<1x128xf32>
    %27 = arith.divf %25, %26 : vector<1x128xf32>
    %cst_15 = arith.constant 9.99999974E-6 : f32
    %28 = vector.broadcast %cst_15 : f32 to vector<1x128xf32>
    %29 = arith.addf %27, %28 : vector<1x128xf32>
    %30 = math.rsqrt %29 : vector<1x128xf32>
    %31 = arith.mulf %4, %30 : vector<1x128xf32>
    %32 = arith.mulf %20, %31 : vector<1x128xf32>
    %33 = arith.subf %5, %32 : vector<1x128xf32>
    %34 = vector.broadcast %31 : vector<1x128xf32> to vector<2x128xf32>
    %35 = arith.mulf %16, %34 : vector<2x128xf32>
    %36 = vector.broadcast %33 : vector<1x128xf32> to vector<2x128xf32>
    %37 = arith.addf %35, %36 : vector<2x128xf32>
    %c1_16 = arith.constant 1 : index
    %c0_17 = arith.constant 0 : index
    %c0_18 = arith.constant 0 : index
    %38 = vector.load %arg2[%c1_16, %c0_17, %c0_18] : memref<3x128x128xf32, #tpu.memory_space<vmem>>, vector<1x128x128xf32>
    %39 = vector.shape_cast %38 : vector<1x128x128xf32> to vector<128x128xf32>
    %c3 = arith.constant 3 : index
    %c0_19 = arith.constant 0 : index
    %40 = vector.load %arg3[%c3, %c0_19] : memref<8x128xf32, #tpu.memory_space<vmem>>, vector<1x128xf32>
    %c4 = arith.constant 4 : index
    %c0_20 = arith.constant 0 : index
    %41 = vector.load %arg3[%c4, %c0_20] : memref<8x128xf32, #tpu.memory_space<vmem>>, vector<1x128xf32>
    %c5 = arith.constant 5 : index
    %c0_21 = arith.constant 0 : index
    %42 = vector.load %arg3[%c5, %c0_21] : memref<8x128xf32, #tpu.memory_space<vmem>>, vector<1x128xf32>
    %cst_22 = arith.constant dense<0.000000e+00> : vector<2x128xf32>
    %43 = tpu.matmul %37, %39, %cst_22 {dimension_numbers = #tpu.dot_dimension_numbers<[1], [0], [0], [1], [0, 0, 1, 1], [], []>} : vector<2x128xf32>, vector<128x128xf32>, vector<2x128xf32> -> vector<2x128xf32>
    %44 = vector.broadcast %40 : vector<1x128xf32> to vector<2x128xf32>
    %45 = arith.addf %43, %44 : vector<2x128xf32>
    %c1_23 = arith.constant 1 : index
    %46 = memref.load %arg0[%c1_23] : memref<2xf32, #tpu.memory_space<smem>>
    %cst_24 = arith.constant 0.000000e+00 : f32
    %47 = vector.broadcast %cst_24 : f32 to vector<2x128xf32>
    %48 = arith.maximumf %45, %47 : vector<2x128xf32>
    %cst_25 = arith.constant 0.000000e+00 : f32
    %49 = vector.broadcast %cst_25 : f32 to vector<2x128xf32>
    %50 = arith.minimumf %45, %49 : vector<2x128xf32>
    %51 = vector.broadcast %46 : f32 to vector<2x128xf32>
    %52 = arith.mulf %51, %50 : vector<2x128xf32>
    %53 = arith.addf %48, %52 : vector<2x128xf32>
    %cst_26 = arith.constant dense<0.000000e+00> : vector<128xf32>
    %54 = vector.multi_reduction <add>, %53, %cst_26 [0] : vector<2x128xf32> to vector<128xf32>
    %55 = vector.shape_cast %54 : vector<128xf32> to vector<1x128xf32>
    %cst_27 = arith.constant 2.000000e+00 : f32
    %56 = vector.broadcast %cst_27 : f32 to vector<1x128xf32>
    %57 = arith.divf %55, %56 : vector<1x128xf32>
    %58 = vector.broadcast %57 : vector<1x128xf32> to vector<2x128xf32>
    %59 = arith.subf %53, %58 : vector<2x128xf32>
    %60 = arith.mulf %59, %59 : vector<2x128xf32>
    %cst_28 = arith.constant dense<0.000000e+00> : vector<128xf32>
    %61 = vector.multi_reduction <add>, %60, %cst_28 [0] : vector<2x128xf32> to vector<128xf32>
    %62 = vector.shape_cast %61 : vector<128xf32> to vector<1x128xf32>
    %cst_29 = arith.constant 2.000000e+00 : f32
    %63 = vector.broadcast %cst_29 : f32 to vector<1x128xf32>
    %64 = arith.divf %62, %63 : vector<1x128xf32>
    %cst_30 = arith.constant 9.99999974E-6 : f32
    %65 = vector.broadcast %cst_30 : f32 to vector<1x128xf32>
    %66 = arith.addf %64, %65 : vector<1x128xf32>
    %67 = math.rsqrt %66 : vector<1x128xf32>
    %68 = arith.mulf %41, %67 : vector<1x128xf32>
    %69 = arith.mulf %57, %68 : vector<1x128xf32>
    %70 = arith.subf %42, %69 : vector<1x128xf32>
    %71 = vector.broadcast %68 : vector<1x128xf32> to vector<2x128xf32>
    %72 = arith.mulf %53, %71 : vector<2x128xf32>
    %73 = vector.broadcast %70 : vector<1x128xf32> to vector<2x128xf32>
    %74 = arith.addf %72, %73 : vector<2x128xf32>
    %c2_31 = arith.constant 2 : index
    %c0_32 = arith.constant 0 : index
    %c0_33 = arith.constant 0 : index
    %75 = vector.load %arg2[%c2_31, %c0_32, %c0_33] : memref<3x128x128xf32, #tpu.memory_space<vmem>>, vector<1x128x128xf32>
    %76 = vector.shape_cast %75 : vector<1x128x128xf32> to vector<128x128xf32>
    %c6 = arith.constant 6 : index
    %c0_34 = arith.constant 0 : index
    %77 = vector.load %arg3[%c6, %c0_34] : memref<8x128xf32, #tpu.memory_space<vmem>>, vector<1x128xf32>
    %cst_35 = arith.constant dense<0.000000e+00> : vector<2x128xf32>
    %78 = tpu.matmul %74, %76, %cst_35 {dimension_numbers = #tpu.dot_dimension_numbers<[1], [0], [0], [1], [0, 0, 1, 1], [], []>} : vector<2x128xf32>, vector<128x128xf32>, vector<2x128xf32> -> vector<2x128xf32>
    %79 = vector.broadcast %77 : vector<1x128xf32> to vector<2x128xf32>
    %80 = arith.addf %78, %79 : vector<2x128xf32>
    %c0_36 = arith.constant 0 : index
    %c0_37 = arith.constant 0 : index
    %81 = vector.load %arg4[%c0_36, %c0_37] : memref<2x128xf32, #tpu.memory_space<vmem>>, vector<2x128xf32>
    tpu.vector_store %arg4[%c0_36, %c0_37], %80 {strides = array<i32>} : memref<2x128xf32, #tpu.memory_space<vmem>>, vector<2x128xf32>,
    return
  }
}

</mosaic_0001>

<llo_original>
// kernel: dam_general_ml_forward.1
$region0: #{dam_general_ml_forward.1}
  #allocation0 [shape = 'u32[]', space=smem, size = 0x4, offset = 0x4, fixed_abs, tag = 'smem constant byte address 0x4 - core index']
  #allocation1 [shape = 'u32[144,128]{1,0:T(1,128)}', space=vmem, size = 0x12000, scoped, tag = 'internal scratch']
  %s0 = inlined_call_operand.vmem [shape: f32[2], index: 0, kind: input, shape index: {}]
  %s1 = inlined_call_operand.vmem [shape: f32[2,128], index: 1, kind: input, shape index: {}]
  %s2 = inlined_call_operand.vmem [shape: f32[3,128,128], index: 2, kind: input, shape index: {}]
  %s3 = inlined_call_operand.vmem [shape: f32[8,128], index: 3, kind: input, shape index: {}]
  %s4 = inlined_call_operand.hbm [shape: f32[2,128], index: 4, kind: output, shape index: {}]
  %s5 = sld [smem:[#allocation0]]
  $region30: #{dam_general_ml_forward.1} parent=0
    _
  %s7 = ssub.s32 1, %s5
  %s8 = scalar_select 0, %s7, %s5
  $region1: #{dam_general_ml_forward.1} parent=0
    #allocation2 [shape = 'u8[512]{0}', space=smem, size = 0x200, scoped, tag = 'input window, operand 0, single buffered']
    #allocation3 [shape = 's32[1]{0}', space=sflag, size = 0x4, scoped, tag = 'scoped memory for dam_general_ml_forward.1']
    #allocation4 [shape = 's32[1]{0}', space=sflag, size = 0x4, scoped, tag = 'scoped memory for dam_general_ml_forward.1']
    #allocation5 [shape = 'u8[1024]{0}', space=vmem, size = 0x400, scoped, tag = 'output window, operand 0, single buffered']
    %9 = vsyncpa [#allocation4], 0
    %10 = vsyncpa [#allocation3], 0
    // Predicated region
    $region2: #{dam_general_ml_forward.1} parent=1 // pred_check
      _
    $region3: #{dam_general_ml_forward.1} parent=1 // pred_check_branch
      %12 = sbr.rel (0) target = $region5
    $region4: #{dam_general_ml_forward.1} parent=1 // pred_region
      %s14 = ssub.s32 16, 16
      %15 = vsyncadd [#allocation4], %s14
      %s17 = sshll.u32 %s0, 4
      %s18 = int_to_ptr.vmem [resolvable:$true] %s17
      %20 = dma.vmem_to_smem %s18, 16, [#allocation2], [#allocation4]
    $region5: #{dam_general_ml_forward.1} parent=1 // pred_fallthru
      _
    // Predicated region
    $region6: #{dam_general_ml_forward.1} parent=1 // pred_check
      _
    $region7: #{dam_general_ml_forward.1} parent=1 // pred_check_branch
      %22 = sbr.rel (0) target = $region9
    $region8: #{dam_general_ml_forward.1} parent=1 // pred_region
      _
    $region9: #{dam_general_ml_forward.1} parent=1 // pred_fallthru
      _
    // Predicated region
    $region10: #{dam_general_ml_forward.1} parent=1 // pred_check
      _
    $region11: #{dam_general_ml_forward.1} parent=1 // pred_check_branch
      %24 = sbr.rel (0) target = $region13
    $region12: #{dam_general_ml_forward.1} parent=1 // pred_region
      _
    $region13: #{dam_general_ml_forward.1} parent=1 // pred_fallthru
      _
    // Predicated region
    $region14: #{dam_general_ml_forward.1} parent=1 // pred_check
      _
    $region15: #{dam_general_ml_forward.1} parent=1 // pred_check_branch
      %26 = sbr.rel (0) target = $region17
    $region16: #{dam_general_ml_forward.1} parent=1 // pred_region
      _
    $region17: #{dam_general_ml_forward.1} parent=1 // pred_fallthru
      _
    // Predicated region
    $region18: #{dam_general_ml_forward.1} parent=1 // pred_check
      _
    $region19: #{dam_general_ml_forward.1} parent=1 // pred_check_branch
      %28 = sbr.rel (0) target = $region21
    $region20: #{dam_general_ml_forward.1} parent=1 // pred_region
      %29 = dma.done [#allocation4], 16
    $region21: #{dam_general_ml_forward.1} parent=1 // pred_fallthru
      _
    %30 = sfence
    %v31 = vld [vmem:[%s1] sm:$0x3]
    %v32 = vld [vmem:[%s2] sm:$0xff]
    %v33 = vld [vmem:[%s2 + $0x8] sm:$0xff]
    %v34 = vld [vmem:[%s2 + $0x10] sm:$0xff]
    %v35 = vld [vmem:[%s2 + $0x18] sm:$0xff]
    %v36 = vld [vmem:[%s2 + $0x20] sm:$0xff]
    %v37 = vld [vmem:[%s2 + $0x28] sm:$0xff]
    %v38 = vld [vmem:[%s2 + $0x30] sm:$0xff]
    %v39 = vld [vmem:[%s2 + $0x38] sm:$0xff]
    %v40 = vld [vmem:[%s2 + $0x40] sm:$0xff]
    %v41 = vld [vmem:[%s2 + $0x48] sm:$0xff]
    %v42 = vld [vmem:[%s2 + $0x50] sm:$0xff]
    %v43 = vld [vmem:[%s2 + $0x58] sm:$0xff]
    %v44 = vld [vmem:[%s2 + $0x60] sm:$0xff]
    %v45 = vld [vmem:[%s2 + $0x68] sm:$0xff]
    %v46 = vld [vmem:[%s2 + $0x70] sm:$0xff]
    %v47 = vld [vmem:[%s2 + $0x78] sm:$0xff]
    %v48 = vld [vmem:[%s3] sm:$0x1]
    %v49 = vld [vmem:[%s3 + $0x1] sm:$0x1]
    %v50 = vld [vmem:[%s3 + $0x2] sm:$0x1]
    %v51 = vlaneseq
    %v52 = vshrl.u32 %v51, 7
    %v53 = vsub.s32 0, %v52
    %v54 = vrot.slane %v48, %v53
    %55 = vmatprep.subr.mxu0 0.0
    %56 = vmatpush1.msra.mxu0 %v47
    %57 = vmatprep.subr.mxu0 0.0
    %58 = vmatpush1.msra.mxu0 %v46
    %59 = vmatprep.subr.mxu0 0.0
    %60 = vmatpush1.msra.mxu0 %v45
    %61 = vmatprep.subr.mxu0 0.0
    %62 = vmatpush1.msra.mxu0 %v44
    %63 = vmatprep.subr.mxu0 0.0
    %64 = vmatpush1.msra.mxu0 %v43
    %65 = vmatprep.subr.mxu0 0.0
    %66 = vmatpush1.msra.mxu0 %v42
    %67 = vmatprep.subr.mxu0 0.0
    %68 = vmatpush1.msra.mxu0 %v41
    %69 = vmatprep.subr.mxu0 0.0
    %70 = vmatpush1.msra.mxu0 %v40
    %71 = vmatprep.subr.mxu0 0.0
    %72 = vmatpush1.msra.mxu0 %v39
    %73 = vmatprep.subr.mxu0 0.0
    %74 = vmatpush1.msra.mxu0 %v38
    %75 = vmatprep.subr.mxu0 0.0
    %76 = vmatpush1.msra.mxu0 %v37
    %77 = vmatprep.subr.mxu0 0.0
    %78 = vmatpush1.msra.mxu0 %v36
    %79 = vmatprep.subr.mxu0 0.0
    %80 = vmatpush1.msra.mxu0 %v35
    %81 = vmatprep.subr.mxu0 0.0
    %82 = vmatpush1.msra.mxu0 %v34
    %83 = vmatprep.subr.mxu0 0.0
    %84 = vmatpush1.msra.mxu0 %v33
    %85 = vmatprep.subr.mxu0 0.0
    %86 = vmatpush1.msra.mxu0 %v32
    %87 = vmatprep.subr.mxu0 0.0
    %88 = vmatpush2.msra.mxu0 0.0
    %89 = vmatprep.subr.mxu0 0.0
    %90 = vmatpush2.msra.mxu0 0.0
    %91 = vmatprep.subr.mxu0 0.0
    %92 = vmatpush2.msra.mxu0 0.0
    %93 = vmatprep.subr.mxu0 0.0
    %94 = vmatpush2.msra.mxu0 0.0
    %95 = vmatprep.subr.mxu0 0.0
    %96 = vmatpush2.msra.mxu0 0.0
    %97 = vmatprep.subr.mxu0 0.0
    %98 = vmatpush2.msra.mxu0 0.0
    %99 = vmatprep.subr.mxu0 0.0
    %100 = vmatpush2.msra.mxu0 0.0
    %101 = vmatprep.subr.mxu0 0.0
    %102 = vmatpush2.msra.mxu0 0.0
    %103 = vmatprep.subr.mxu0 0.0
    %104 = vmatpush2.msra.mxu0 0.0
    %105 = vmatprep.subr.mxu0 0.0
    %106 = vmatpush2.msra.mxu0 0.0
    %107 = vmatprep.subr.mxu0 0.0
    %108 = vmatpush2.msra.mxu0 0.0
    %109 = vmatprep.subr.mxu0 0.0
    %110 = vmatpush2.msra.mxu0 0.0
    %111 = vmatprep.subr.mxu0 0.0
    %112 = vmatpush2.msra.mxu0 0.0
    %113 = vmatprep.subr.mxu0 0.0
    %114 = vmatpush2.msra.mxu0 0.0
    %115 = vmatprep.subr.mxu0 0.0
    %116 = vmatpush2.msra.mxu0 0.0
    %117 = vmatprep.subr.mxu0 0.0
    %118 = vmatpush2.msra.mxu0 0.0
    %119 = vmatprep.mubr.f32.mxu0 0.0
    %120 = vmatmul.mubr.f32.gmra.mxu0 %v31
    %v121 = vpop.f32.mrf.mxu0
    %v122 = vadd.f32 %v54, %v121
    %v123 = vpop.f32.mrf.mxu0
    %124 = vdwg.mxu0
    %s125 = sld [smem:[#allocation2]]
    %v126 = vmax.f32 %v122, 0.0
    %v127 = vmin.f32 %v122, 0.0
    %v128 = vstv %s125
    %v129 = vmul.f32 %v128, %v127
    %v130 = vadd.f32 %v126, %v129
    %vm131 = vcmask 1041408
    %v132 = vsel %vm131, %v130, 0.0
    %v133 = vrot.slane %v132, 4
    %v134 = vadd.f32 %v132, %v133
    %v135 = vrot.slane %v134, 2
    %v136 = vadd.f32 %v134, %v135
    %v137 = vrot.slane %v136, 1
    %v138 = vadd.f32 %v136, %v137
    %v139 = vrcp.pop 2.0
    %v140 = vmul.f32 %v138, %v139
    %v141 = vsub.f32 %v130, %v140
    %v142 = vmul.f32 %v141, %v141
    %v143 = vsel %vm131, %v142, 0.0
    %v144 = vrot.slane %v143, 4
    %v145 = vadd.f32 %v143, %v144
    %v146 = vrot.slane %v145, 2
    %v147 = vadd.f32 %v145, %v146
    %v148 = vrot.slane %v147, 1
    %v149 = vadd.f32 %v147, %v148
    %v150 = vmul.f32 %v149, %v139
    %v151 = vadd.f32 %v150, 1e-05
    %v152 = vrsqrt.pop %v151
    %v153 = vmul.f32 %v49, %v152
    %v154 = vmul.f32 %v140, %v153
    %v155 = vsub.f32 %v50, %v154
    %v156 = vlaneseq
    %v157 = vshrl.u32 %v156, 7
    %v158 = vsub.s32 0, %v157
    %v159 = vrot.slane %v153, %v158
    %v160 = vmul.f32 %v130, %v159
    %v161 = vlaneseq
    %v162 = vshrl.u32 %v161, 7
    %v163 = vsub.s32 0, %v162
    %v164 = vrot.slane %v155, %v163
    %v165 = vadd.f32 %v160, %v164
    %s166 = scalar_lea.vmem %s2, 128
    %v167 = vld [vmem:[%s166] sm:$0xff]
    %v168 = vld [vmem:[%s166 + $0x8] sm:$0xff]
    %v169 = vld [vmem:[%s166 + $0x10] sm:$0xff]
    %v170 = vld [vmem:[%s166 + $0x18] sm:$0xff]
    %v171 = vld [vmem:[%s166 + $0x20] sm:$0xff]
    %v172 = vld [vmem:[%s166 + $0x28] sm:$0xff]
    %v173 = vld [vmem:[%s166 + $0x30] sm:$0xff]
    %v174 = vld [vmem:[%s166 + $0x38] sm:$0xff]
    %v175 = vld [vmem:[%s166 + $0x40] sm:$0xff]
    %v176 = vld [vmem:[%s166 + $0x48] sm:$0xff]
    %v177 = vld [vmem:[%s166 + $0x50] sm:$0xff]
    %v178 = vld [vmem:[%s166 + $0x58] sm:$0xff]
    %v179 = vld [vmem:[%s166 + $0x60] sm:$0xff]
    %v180 = vld [vmem:[%s166 + $0x68] sm:$0xff]
    %v181 = vld [vmem:[%s166 + $0x70] sm:$0xff]
    %v182 = vld [vmem:[%s166 + $0x78] sm:$0xff]
    %v183 = vld [vmem:[%s3 + $0x3] sm:$0x1]
    %v184 = vld [vmem:[%s3 + $0x4] sm:$0x1]
    %v185 = vld [vmem:[%s3 + $0x5] sm:$0x1]
    %v186 = vlaneseq
    %v187 = vshrl.u32 %v186, 7
    %v188 = vsub.s32 0, %v187
    %v189 = vrot.slane %v183, %v188
    %190 = vmatprep.subr.mxu0 0.0
    %191 = vmatpush1.msra.mxu0 %v182
    %192 = vmatprep.subr.mxu0 0.0
    %193 = vmatpush1.msra.mxu0 %v181
    %194 = vmatprep.subr.mxu0 0.0
    %195 = vmatpush1.msra.mxu0 %v180
    %196 = vmatprep.subr.mxu0 0.0
    %197 = vmatpush1.msra.mxu0 %v179
    %198 = vmatprep.subr.mxu0 0.0
    %199 = vmatpush1.msra.mxu0 %v178
    %200 = vmatprep.subr.mxu0 0.0
    %201 = vmatpush1.msra.mxu0 %v177
    %202 = vmatprep.subr.mxu0 0.0
    %203 = vmatpush1.msra.mxu0 %v176
    %204 = vmatprep.subr.mxu0 0.0
    %205 = vmatpush1.msra.mxu0 %v175
    %206 = vmatprep.subr.mxu0 0.0
    %207 = vmatpush1.msra.mxu0 %v174
    %208 = vmatprep.subr.mxu0 0.0
    %209 = vmatpush1.msra.mxu0 %v173
    %210 = vmatprep.subr.mxu0 0.0
    %211 = vmatpush1.msra.mxu0 %v172
    %212 = vmatprep.subr.mxu0 0.0
    %213 = vmatpush1.msra.mxu0 %v171
    %214 = vmatprep.subr.mxu0 0.0
    %215 = vmatpush1.msra.mxu0 %v170
    %216 = vmatprep.subr.mxu0 0.0
    %217 = vmatpush1.msra.mxu0 %v169
    %218 = vmatprep.subr.mxu0 0.0
    %219 = vmatpush1.msra.mxu0 %v168
    %220 = vmatprep.subr.mxu0 0.0
    %221 = vmatpush1.msra.mxu0 %v167
    %222 = vmatprep.subr.mxu0 0.0
    %223 = vmatpush2.msra.mxu0 0.0
    %224 = vmatprep.subr.mxu0 0.0
    %225 = vmatpush2.msra.mxu0 0.0
    %226 = vmatprep.subr.mxu0 0.0
    %227 = vmatpush2.msra.mxu0 0.0
    %228 = vmatprep.subr.mxu0 0.0
    %229 = vmatpush2.msra.mxu0 0.0
    %230 = vmatprep.subr.mxu0 0.0
    %231 = vmatpush2.msra.mxu0 0.0
    %232 = vmatprep.subr.mxu0 0.0
    %233 = vmatpush2.msra.mxu0 0.0
    %234 = vmatprep.subr.mxu0 0.0
    %235 = vmatpush2.msra.mxu0 0.0
    %236 = vmatprep.subr.mxu0 0.0
    %237 = vmatpush2.msra.mxu0 0.0
    %238 = vmatprep.subr.mxu0 0.0
    %239 = vmatpush2.msra.mxu0 0.0
    %240 = vmatprep.subr.mxu0 0.0
    %241 = vmatpush2.msra.mxu0 0.0
    %242 = vmatprep.subr.mxu0 0.0
    %243 = vmatpush2.msra.mxu0 0.0
    %244 = vmatprep.subr.mxu0 0.0
    %245 = vmatpush2.msra.mxu0 0.0
    %246 = vmatprep.subr.mxu0 0.0
    %247 = vmatpush2.msra.mxu0 0.0
    %248 = vmatprep.subr.mxu0 0.0
    %249 = vmatpush2.msra.mxu0 0.0
    %250 = vmatprep.subr.mxu0 0.0
    %251 = vmatpush2.msra.mxu0 0.0
    %252 = vmatprep.subr.mxu0 0.0
    %253 = vmatpush2.msra.mxu0 0.0
    %254 = vmatprep.mubr.f32.mxu0 0.0
    %255 = vmatmul.mubr.f32.gmra.mxu0 %v165
    %v256 = vpop.f32.mrf.mxu0
    %v257 = vadd.f32 %v189, %v256
    %v258 = vpop.f32.mrf.mxu0
    %259 = vdwg.mxu0
    %s260 = sld [smem:[#allocation2 + $0x1]]
    %v261 = vmax.f32 %v257, 0.0
    %v262 = vmin.f32 %v257, 0.0
    %v263 = vstv %s260
    %v264 = vmul.f32 %v263, %v262
    %v265 = vadd.f32 %v261, %v264
    %v266 = vsel %vm131, %v265, 0.0
    %v267 = vrot.slane %v266, 4
    %v268 = vadd.f32 %v266, %v267
    %v269 = vrot.slane %v268, 2
    %v270 = vadd.f32 %v268, %v269
    %v271 = vrot.slane %v270, 1
    %v272 = vadd.f32 %v270, %v271
    %v273 = vmul.f32 %v272, %v139
    %v274 = vsub.f32 %v265, %v273
    %v275 = vmul.f32 %v274, %v274
    %v276 = vsel %vm131, %v275, 0.0
    %v277 = vrot.slane %v276, 4
    %v278 = vadd.f32 %v276, %v277
    %v279 = vrot.slane %v278, 2
    %v280 = vadd.f32 %v278, %v279
    %v281 = vrot.slane %v280, 1
    %v282 = vadd.f32 %v280, %v281
    %v283 = vmul.f32 %v282, %v139
    %v284 = vadd.f32 %v283, 1e-05
    %v285 = vrsqrt.pop %v284
    %v286 = vmul.f32 %v184, %v285
    %v287 = vmul.f32 %v273, %v286
    %v288 = vsub.f32 %v185, %v287
    %v289 = vlaneseq
    %v290 = vshrl.u32 %v289, 7
    %v291 = vsub.s32 0, %v290
    %v292 = vrot.slane %v286, %v291
    %v293 = vmul.f32 %v265, %v292
    %v294 = vlaneseq
    %v295 = vshrl.u32 %v294, 7
    %v296 = vsub.s32 0, %v295
    %v297 = vrot.slane %v288, %v296
    %v298 = vadd.f32 %v293, %v297
    %s299 = scalar_lea.vmem %s2, 256
    %v300 = vld [vmem:[%s299] sm:$0xff]
    %v301 = vld [vmem:[%s299 + $0x8] sm:$0xff]
    %v302 = vld [vmem:[%s299 + $0x10] sm:$0xff]
    %v303 = vld [vmem:[%s299 + $0x18] sm:$0xff]
    %v304 = vld [vmem:[%s299 + $0x20] sm:$0xff]
    %v305 = vld [vmem:[%s299 + $0x28] sm:$0xff]
    %v306 = vld [vmem:[%s299 + $0x30] sm:$0xff]
    %v307 = vld [vmem:[%s299 + $0x38] sm:$0xff]
    %v308 = vld [vmem:[%s299 + $0x40] sm:$0xff]
    %v309 = vld [vmem:[%s299 + $0x48] sm:$0xff]
    %v310 = vld [vmem:[%s299 + $0x50] sm:$0xff]
    %v311 = vld [vmem:[%s299 + $0x58] sm:$0xff]
    %v312 = vld [vmem:[%s299 + $0x60] sm:$0xff]
    %v313 = vld [vmem:[%s299 + $0x68] sm:$0xff]
    %v314 = vld [vmem:[%s299 + $0x70] sm:$0xff]
    %v315 = vld [vmem:[%s299 + $0x78] sm:$0xff]
    %v316 = vld [vmem:[%s3 + $0x6] sm:$0x1]
    %v317 = vlaneseq
    %v318 = vshrl.u32 %v317, 7
    %v319 = vsub.s32 0, %v318
    %v320 = vrot.slane %v316, %v319
    %321 = vmatprep.subr.mxu0 0.0
    %322 = vmatpush1.msra.mxu0 %v315
    %323 = vmatprep.subr.mxu0 0.0
    %324 = vmatpush1.msra.mxu0 %v314
    %325 = vmatprep.subr.mxu0 0.0
    %326 = vmatpush1.msra.mxu0 %v313
    %327 = vmatprep.subr.mxu0 0.0
    %328 = vmatpush1.msra.mxu0 %v312
    %329 = vmatprep.subr.mxu0 0.0
    %330 = vmatpush1.msra.mxu0 %v311
    %331 = vmatprep.subr.mxu0 0.0
    %332 = vmatpush1.msra.mxu0 %v310
    %333 = vmatprep.subr.mxu0 0.0
    %334 = vmatpush1.msra.mxu0 %v309
    %335 = vmatprep.subr.mxu0 0.0
    %336 = vmatpush1.msra.mxu0 %v308
    %337 = vmatprep.subr.mxu0 0.0
    %338 = vmatpush1.msra.mxu0 %v307
    %339 = vmatprep.subr.mxu0 0.0
    %340 = vmatpush1.msra.mxu0 %v306
    %341 = vmatprep.subr.mxu0 0.0
    %342 = vmatpush1.msra.mxu0 %v305
    %343 = vmatprep.subr.mxu0 0.0
    %344 = vmatpush1.msra.mxu0 %v304
    %345 = vmatprep.subr.mxu0 0.0
    %346 = vmatpush1.msra.mxu0 %v303
    %347 = vmatprep.subr.mxu0 0.0
    %348 = vmatpush1.msra.mxu0 %v302
    %349 = vmatprep.subr.mxu0 0.0
    %350 = vmatpush1.msra.mxu0 %v301
    %351 = vmatprep.subr.mxu0 0.0
    %352 = vmatpush1.msra.mxu0 %v300
    %353 = vmatprep.subr.mxu0 0.0
    %354 = vmatpush2.msra.mxu0 0.0
    %355 = vmatprep.subr.mxu0 0.0
    %356 = vmatpush2.msra.mxu0 0.0
    %357 = vmatprep.subr.mxu0 0.0
    %358 = vmatpush2.msra.mxu0 0.0
    %359 = vmatprep.subr.mxu0 0.0
    %360 = vmatpush2.msra.mxu0 0.0
    %361 = vmatprep.subr.mxu0 0.0
    %362 = vmatpush2.msra.mxu0 0.0
    %363 = vmatprep.subr.mxu0 0.0
    %364 = vmatpush2.msra.mxu0 0.0
    %365 = vmatprep.subr.mxu0 0.0
    %366 = vmatpush2.msra.mxu0 0.0
    %367 = vmatprep.subr.mxu0 0.0
    %368 = vmatpush2.msra.mxu0 0.0
    %369 = vmatprep.subr.mxu0 0.0
    %370 = vmatpush2.msra.mxu0 0.0
    %371 = vmatprep.subr.mxu0 0.0
    %372 = vmatpush2.msra.mxu0 0.0
    %373 = vmatprep.subr.mxu0 0.0
    %374 = vmatpush2.msra.mxu0 0.0
    %375 = vmatprep.subr.mxu0 0.0
    %376 = vmatpush2.msra.mxu0 0.0
    %377 = vmatprep.subr.mxu0 0.0
    %378 = vmatpush2.msra.mxu0 0.0
    %379 = vmatprep.subr.mxu0 0.0
    %380 = vmatpush2.msra.mxu0 0.0
    %381 = vmatprep.subr.mxu0 0.0
    %382 = vmatpush2.msra.mxu0 0.0
    %383 = vmatprep.subr.mxu0 0.0
    %384 = vmatpush2.msra.mxu0 0.0
    %385 = vmatprep.mubr.f32.mxu0 0.0
    %386 = vmatmul.mubr.f32.gmra.mxu0 %v298
    %v387 = vpop.f32.mrf.mxu0
    %v388 = vadd.f32 %v320, %v387
    %v389 = vpop.f32.mrf.mxu0
    %390 = vdwg.mxu0
    %391 = vst [vmem:[#allocation5] sm:$0x3] %v388
    // Predicated region
    $region22: #{dam_general_ml_forward.1} parent=1 // pred_check
      _
    $region23: #{dam_general_ml_forward.1} parent=1 // pred_check_branch
      %393 = sbr.rel (0) target = $region25
    $region24: #{dam_general_ml_forward.1} parent=1 // pred_region
      %s395 = ssub.s32 32, 32
      %396 = vsyncadd [#allocation3], %s395
      %s398 = sshll.u32 [#allocation5], 4
      %s399 = int_to_ptr.vmem [resolvable:$true] %s398
      %401 = dma.vmem_to_hbm [thread:$0]  %s399, 32, %s4, [#allocation3]
    $region25: #{dam_general_ml_forward.1} parent=1 // pred_fallthru
      _
    // Predicated region
    $region26: #{dam_general_ml_forward.1} parent=1 // pred_check
      _
    $region27: #{dam_general_ml_forward.1} parent=1 // pred_check_branch
      %403 = sbr.rel (0) target = $region29
    $region28: #{dam_general_ml_forward.1} parent=1 // pred_region
      %404 = dma.done [#allocation3], 32
    $region29: #{dam_general_ml_forward.1} parent=1 // pred_fallthru
      _
    %405 = vsyncpa [#allocation3], 1
    %406 = vsyncpa [#allocation4], 1

</llo_original>
